<compile_context>
chip_gen: v7x
topology: tpu7x:2x2x1
jax: 0.10.0
libtpu: 0.0.40
codegen_flags: <defaults>
</compile_context>

<pallas_src>
import functools
import math

import jax
import jax.numpy as jnp
from jax.experimental import pallas as pl
from jax.experimental.pallas import tpu as pltpu


_VMEM_BUDGET = 16 * 1024 * 1024     # working-set budget (fits v5e scoped default)


def _round_up(x, m):
    return ((x + m - 1) // m) * m


def _cdiv(a, b):
    return -(-a // b)


def _choose_batch_tile(B, tb_cap):
    """Pick (tb, nb) with tb % 8 == 0, tb <= tb_cap, minimizing batch padding.

    Prefers an exact divisor of B (no padding) with an even number of grid
    steps >= 2 (balanced megacore split on v7x); falls back to minimal padding.
    """
    best = None
    if B % 8 == 0:
        start = (min(tb_cap, B) // 8) * 8
        for tb in range(start, 7, -8):
            if B % tb == 0:
                nb = B // tb
                if nb >= 2 and nb % 2 == 0:
                    return tb, nb            # no padding, even grid
                if best is None:
                    best = (tb, nb)          # no padding, possibly odd/one step
        if best is not None:
            return best
    # Fall back: minimal padding, bump to an even grid count when B is big enough.
    nb = max(1, _cdiv(B, tb_cap))
    if B > 8:
        if nb == 1:
            nb = 2
        elif nb % 2:
            nb += 1
    tb = _round_up(_cdiv(B, nb), 8)
    return tb, nb


def _masked_adj_kernel(m_ref, st_ref, w_ref, *out_refs, n_groups, with_masked):
    """Fused hot path, lane-dense.

    sym    = (sigmoid(M) + sigmoid(M)^T) / 2   (transposed operand arrives pre-sigmoided)
    masked = W * sym
    new    = W - masked
    l1     = per-graph partial sums of |masked| over 128-lane groups
    """
    if with_masked:
        masked_ref, new_ref, l1_ref = out_refs
    else:
        new_ref, l1_ref = out_refs

    sym = (jax.nn.sigmoid(m_ref[...]) + st_ref[...]) * 0.5   # 1 EUP sigmoid / element
    w = w_ref[...]
    masked = w * sym
    if with_masked:
        masked_ref[...] = masked
    new_ref[...] = w - masked

    # L1 partials: abs per 128-lane slice, tree-reduced with up to 4 accumulators.
    n_acc = min(4, n_groups)
    accs = [jnp.abs(masked[:, g * 128:(g + 1) * 128]) for g in range(n_acc)]
    for g in range(n_acc, n_groups):
        accs[g % n_acc] = accs[g % n_acc] + jnp.abs(masked[:, g * 128:(g + 1) * 128])
    part = accs[0]
    for extra in accs[1:]:
        part = part + extra
    l1_ref[...] = part                                       # lane-dense [tb, 128]


def masked_adj_pallas(mask, weighted_adj, *, max_tb=512, return_masked=True):
    """Batched fused masked-adjacency op.

    mask, weighted_adj: [B, N, N] (or [N, N] for a single graph), float32.
    Returns (masked_adj, new_weights, l1) or (new_weights, l1) if return_masked=False.
    """
    # TODO(synk): bf16 I/O would halve HBM bytes (kernel is bandwidth-bound) but
    # changes numerics vs. the float32 torch module, so keep float32 here.
    mask = jnp.asarray(mask, jnp.float32)
    w = jnp.asarray(weighted_adj, jnp.float32)
    single = (mask.ndim == 2)
    if single:
        mask = mask[None]
        w = w[None]
    B, N, _ = mask.shape

    # sym_mask^T arrives pre-sigmoided: sigmoid fuses into the (already needed)
    # XLA transpose pass, so the kernel does at most one EUP sigmoid per element.
    st = jax.nn.sigmoid(jnp.swapaxes(mask, -1, -2))

    n_flat = N * N
    n_pad = _round_up(n_flat, 128)                # lane-dense last dim
    n_out_big = 2 if return_masked else 1

    # Derive the batch tile from a VMEM working-set budget (double-buffered).
    row_bytes = 2 * ((3 + n_out_big) * n_pad + 128) * 4
    tb_cap = max(8, min(max_tb, (_VMEM_BUDGET // row_bytes) // 8 * 8))
    tb, nb = _choose_batch_tile(B, tb_cap)
    b_pad = tb * nb
    need_pad = (b_pad != B) or (n_pad != n_flat)

    def prep(x):
        x = x.reshape(B, n_flat)
        if need_pad:
            x = jnp.pad(x, ((0, b_pad - B), (0, n_pad - n_flat)))
        return x

    m_f, st_f, w_f = prep(mask), prep(st), prep(w)

    mat_spec = pl.BlockSpec((tb, n_pad), lambda b: (b, 0))
    l1_spec = pl.BlockSpec((tb, 128), lambda b: (b, 0))
    big = jax.ShapeDtypeStruct((b_pad, n_pad), jnp.float32)
    l1_shape = jax.ShapeDtypeStruct((b_pad, 128), jnp.float32)

    # Alias only freshly-created intermediates (otherwise XLA inserts a copy that
    # defeats the saving).  st_f is always fresh (sigmoid+transpose output); w_f is
    # fresh only when jnp.pad ran.
    if return_masked:
        out_shape = (big, big, l1_shape)
        out_specs = (mat_spec, mat_spec, l1_spec)
        aliases = {1: 0}
        if need_pad:
            aliases[2] = 1
    else:
        out_shape = (big, l1_shape)
        out_specs = (mat_spec, l1_spec)
        aliases = {2: 0} if need_pad else {}

    cost = pl.CostEstimate(
        flops=7 * b_pad * n_pad,
        transcendentals=b_pad * n_pad,
        bytes_accessed=(3 + n_out_big) * b_pad * n_pad * 4 + b_pad * 128 * 4,
    )

    outs = pl.pallas_call(
        functools.partial(_masked_adj_kernel, n_groups=n_pad // 128,
                          with_masked=return_masked),
        out_shape=out_shape,
        grid=(nb,),
        in_specs=[mat_spec, mat_spec, mat_spec],
        out_specs=out_specs,
        input_output_aliases=aliases,
        cost_estimate=cost,
        compiler_params=pltpu.CompilerParams(
            dimension_semantics=("parallel",),
            vmem_limit_bytes=32 * 1024 * 1024),
    )(m_f, st_f, w_f)

    def unpack_big(x):
        if need_pad:
            x = x[:B, :n_flat]
        x = x.reshape(B, N, N)
        return x[0] if single else x

    l1_part = outs[-1]
    if need_pad:
        l1_part = l1_part[:B]
    l1 = jnp.sum(l1_part, axis=-1)            # finish tiny reduction in the wrapper
    if single:
        l1 = l1[0]

    if return_masked:
        return unpack_big(outs[0]), unpack_big(outs[1]), l1
    return unpack_big(outs[0]), l1


def build_adj_mask(key, n_nodes, batch=None):
    # torch.nn.init.calculate_gain('relu') = sqrt(2); std = sqrt(2)*sqrt(2/(2N))
    std = math.sqrt(2.0) * math.sqrt(2.0 / (n_nodes + n_nodes))
    shape = (n_nodes, n_nodes) if batch is None else (batch, n_nodes, n_nodes)
    return 1.0 + std * jax.random.normal(key, shape, dtype=jnp.float32)


def build_weighted_adj(key, n_nodes, batch=None):
    # Glue stand-in for _rebuild_weighted_adj: symmetric weighted adjacency,
    # zero diagonal, ~half the edges present.
    shape = (n_nodes, n_nodes) if batch is None else (batch, n_nodes, n_nodes)
    w = jax.random.uniform(key, shape, dtype=jnp.float32)
    upper = jnp.triu(w, k=1)
    upper = upper * (upper > 0.5).astype(jnp.float32)
    return upper + jnp.swapaxes(upper, -1, -2)


def reference(mask, weighted_adj):
    mask = jnp.asarray(mask, jnp.float32)
    w = jnp.asarray(weighted_adj, jnp.float32)
    sym = jax.nn.sigmoid(mask)
    sym = (sym + jnp.swapaxes(sym, -1, -2)) / 2.0
    masked = w * sym
    new_w = w - masked
    l1 = jnp.sum(jnp.abs(masked), axis=(-2, -1))
    return masked, new_w, l1


if __name__ == "__main__":
    key = jax.random.PRNGKey(0)
    run = jax.jit(masked_adj_pallas, static_argnames=("max_tb", "return_masked"))

    def check(batch, n_nodes, k, return_masked=True):
        k_mask, k_adj = jax.random.split(k)
        mask = build_adj_mask(k_mask, n_nodes, batch)
        w = build_weighted_adj(k_adj, n_nodes, batch)
        out = run(mask, w, return_masked=return_masked)
        jax.block_until_ready(out)
        ref_masked, ref_new, ref_l1 = reference(mask, w)
        if return_masked:
            masked, new_w, l1 = out
            assert jnp.allclose(masked, ref_masked, atol=1e-5, rtol=1e-5)
        else:
            new_w, l1 = out
        assert jnp.allclose(new_w, ref_new, atol=1e-5, rtol=1e-5)
        assert jnp.allclose(l1, ref_l1, atol=1e-3, rtol=1e-5)

    k0, k1, k2, k3, k4 = jax.random.split(key, 5)
    check(batch=None, n_nodes=16, k=k0)        # single graph (matches torch module)
    check(batch=12, n_nodes=16, k=k1)          # ragged batch -> minimal padding path
    check(batch=4, n_nodes=10, k=k2)           # lane padding (100 -> 128 lanes)
    check(batch=1200, n_nodes=16, k=k3)        # exact divisor tile: tb=200, nb=6, no pad
    check(batch=1200, n_nodes=16, k=k4, return_masked=False)   # L1-only variant

    # TODO(synk): oracle.predict(graph) / oracle.predict(cf_instance) are external model
    # calls with no Pallas equivalent; pred1/pred2 are produced outside this kernel.
    # TODO(synk): torch.where(new_weights != 0) yields a dynamic-shape sparse edge list;
    # we return the dense new_weights matrix and leave extraction to host-side glue.
    # TODO(synk): _rebuild_weighted_adj is a host-side numpy scatter over graph.data;
    # build_weighted_adj above is deterministic stand-in glue.

    print("KERNEL_OK")
</pallas_src>

<mosaic_0001>
module attributes {stable_mosaic.version = 11 : i64} {
  func.func @_masked_adj_kernel(%arg0: i32, %arg1: memref<8x256xf32, #tpu.memory_space<vmem>>, %arg2: memref<8x256xf32, #tpu.memory_space<vmem>>, %arg3: memref<8x256xf32, #tpu.memory_space<vmem>>, %arg4: memref<8x256xf32, #tpu.memory_space<vmem>>, %arg5: memref<8x256xf32, #tpu.memory_space<vmem>>, %arg6: memref<8x128xf32, #tpu.memory_space<vmem>>) attributes {dimension_semantics = [#tpu.dimension_semantics<parallel>], iteration_bounds = array<i64: 1>, scalar_prefetch = 0 : i64, scratch_operands = 0 : i64, tpu.core_type = #tpu.core_type<tc>, window_params = [{transform_indices = @transform_0, window_bounds = array<i64: 8, 256>}, {transform_indices = @transform_1, window_bounds = array<i64: 8, 256>}, {transform_indices = @transform_2, window_bounds = array<i64: 8, 256>}, {transform_indices = @transform_3, window_bounds = array<i64: 8, 256>}, {transform_indices = @transform_4, window_bounds = array<i64: 8, 256>}, {transform_indices = @transform_5, window_bounds = array<i64: 8, 128>}]} {
    %c0 = arith.constant 0 : index
    %c0_0 = arith.constant 0 : index
    %0 = vector.load %arg1[%c0, %c0_0] : memref<8x256xf32, #tpu.memory_space<vmem>>, vector<8x256xf32>
    %1 = arith.negf %0 : vector<8x256xf32>
    %2 = math.exp %1 : vector<8x256xf32>
    %cst = arith.constant 1.000000e+00 : f32
    %3 = vector.broadcast %cst : f32 to vector<8x256xf32>
    %4 = arith.addf %3, %2 : vector<8x256xf32>
    %5 = arith.divf %3, %4 : vector<8x256xf32>
    %c0_1 = arith.constant 0 : index
    %c0_2 = arith.constant 0 : index
    %6 = vector.load %arg2[%c0_1, %c0_2] : memref<8x256xf32, #tpu.memory_space<vmem>>, vector<8x256xf32>
    %7 = arith.addf %5, %6 : vector<8x256xf32>
    %cst_3 = arith.constant 5.000000e-01 : f32
    %8 = vector.broadcast %cst_3 : f32 to vector<8x256xf32>
    %9 = arith.mulf %7, %8 : vector<8x256xf32>
    %c0_4 = arith.constant 0 : index
    %c0_5 = arith.constant 0 : index
    %10 = vector.load %arg3[%c0_4, %c0_5] : memref<8x256xf32, #tpu.memory_space<vmem>>, vector<8x256xf32>
    %11 = arith.mulf %10, %9 : vector<8x256xf32>
    %c0_6 = arith.constant 0 : index
    %c0_7 = arith.constant 0 : index
    %12 = vector.load %arg4[%c0_6, %c0_7] : memref<8x256xf32, #tpu.memory_space<vmem>>, vector<8x256xf32>
    tpu.vector_store %arg4[%c0_6, %c0_7], %11 {strides = array<i32>} : memref<8x256xf32, #tpu.memory_space<vmem>>, vector<8x256xf32>,
    %13 = arith.subf %10, %11 : vector<8x256xf32>
    %c0_8 = arith.constant 0 : index
    %c0_9 = arith.constant 0 : index
    %14 = vector.load %arg5[%c0_8, %c0_9] : memref<8x256xf32, #tpu.memory_space<vmem>>, vector<8x256xf32>
    tpu.vector_store %arg5[%c0_8, %c0_9], %13 {strides = array<i32>} : memref<8x256xf32, #tpu.memory_space<vmem>>, vector<8x256xf32>,
    %15 = vector.extract_strided_slice %11 {offsets = [0, 0], sizes = [8, 128], strides = [1, 1]} : vector<8x256xf32> to vector<8x128xf32>
    %16 = math.absf %15 : vector<8x128xf32>
    %17 = vector.extract_strided_slice %11 {offsets = [0, 128], sizes = [8, 128], strides = [1, 1]} : vector<8x256xf32> to vector<8x128xf32>
    %18 = math.absf %17 : vector<8x128xf32>
    %19 = arith.addf %16, %18 : vector<8x128xf32>
    %c0_10 = arith.constant 0 : index
    %c0_11 = arith.constant 0 : index
    %20 = vector.load %arg6[%c0_10, %c0_11] : memref<8x128xf32, #tpu.memory_space<vmem>>, vector<8x128xf32>
    tpu.vector_store %arg6[%c0_10, %c0_11], %19 {strides = array<i32>} : memref<8x128xf32, #tpu.memory_space<vmem>>, vector<8x128xf32>,
    return
  }
  func.func @transform_0(%arg0: i32) -> (i32, i32) {
    %c0_i32 = arith.constant 0 : i32
    %c0_i32_0 = arith.constant 0 : i32
    return %arg0, %c0_i32 : i32, i32
  }
  func.func @transform_1(%arg0: i32) -> (i32, i32) {
    %c0_i32 = arith.constant 0 : i32
    %c0_i32_0 = arith.constant 0 : i32
    return %arg0, %c0_i32 : i32, i32
  }
  func.func @transform_2(%arg0: i32) -> (i32, i32) {
    %c0_i32 = arith.constant 0 : i32
    %c0_i32_0 = arith.constant 0 : i32
    return %arg0, %c0_i32 : i32, i32
  }
  func.func @transform_3(%arg0: i32) -> (i32, i32) {
    %c0_i32 = arith.constant 0 : i32
    %c0_i32_0 = arith.constant 0 : i32
    return %arg0, %c0_i32 : i32, i32
  }
  func.func @transform_4(%arg0: i32) -> (i32, i32) {
    %c0_i32 = arith.constant 0 : i32
    %c0_i32_0 = arith.constant 0 : i32
    return %arg0, %c0_i32 : i32, i32
  }
  func.func @transform_5(%arg0: i32) -> (i32, i32) {
    %c0_i32 = arith.constant 0 : i32
    %c0_i32_0 = arith.constant 0 : i32
    return %arg0, %c0_i32 : i32, i32
  }
}

</mosaic_0001>

<llo_original>
// kernel: masked_adj_pallas.1
$region0: #{masked_adj_pallas.1}
  #allocation0 [shape = 'u32[]', space=smem, size = 0x4, offset = 0x4, fixed_abs, tag = 'smem constant byte address 0x4 - core index']
  #allocation1 [shape = 'u32[144,128]{1,0:T(1,128)}', space=vmem, size = 0x12000, scoped, tag = 'internal scratch']
  %s0 = inlined_call_operand.vmem [shape: f32[8,256], index: 0, kind: input, shape index: {}]
  %s1 = inlined_call_operand.vmem [shape: f32[8,256], index: 1, kind: input, shape index: {}, may-alias: {1,3}]
  %s2 = inlined_call_operand.vmem [shape: f32[8,256], index: 2, kind: input, shape index: {}, may-alias: {2,4}]
  %s3 = inlined_call_operand.vmem [shape: f32[8,256], index: 3, kind: output, shape index: {0}, may-alias: {1,3}]
  %s4 = inlined_call_operand.vmem [shape: f32[8,256], index: 4, kind: output, shape index: {1}, may-alias: {2,4}]
  %s5 = inlined_call_operand.vmem [shape: f32[8,128], index: 5, kind: output, shape index: {2}]
  %6 = xla_tuple %s3, %s4, %s5
  %s7 = sld [smem:[#allocation0]]
  $region38: #{masked_adj_pallas.1} parent=0
    _
  %s9 = ssub.s32 1, %s7
  %s10 = scalar_select 0, %s9, %s7
  // Predicated region
  $region2: #{masked_adj_pallas.1} parent=0 // pred_check
    _
  $region3: #{masked_adj_pallas.1} parent=0 // pred_check_branch
    %12 = sbr.rel (0) target = $region5
  $region4: #{masked_adj_pallas.1} parent=0 // pred_region
    _
  $region5: #{masked_adj_pallas.1} parent=0 // pred_fallthru
    _
  // Predicated region
  $region6: #{masked_adj_pallas.1} parent=0 // pred_check
    _
  $region7: #{masked_adj_pallas.1} parent=0 // pred_check_branch
    %14 = sbr.rel (0) target = $region9
  $region8: #{masked_adj_pallas.1} parent=0 // pred_region
    _
  $region9: #{masked_adj_pallas.1} parent=0 // pred_fallthru
    _
  // Predicated region
  $region10: #{masked_adj_pallas.1} parent=0 // pred_check
    _
  $region11: #{masked_adj_pallas.1} parent=0 // pred_check_branch
    %16 = sbr.rel (0) target = $region13
  $region12: #{masked_adj_pallas.1} parent=0 // pred_region
    _
  $region13: #{masked_adj_pallas.1} parent=0 // pred_fallthru
    _
  %v17 = vld [vmem:[%s0] sm:$0xff]
  %v18 = vld [vmem:[%s0 + $0x8] sm:$0xff]
  %v19 = vxor.u32 %v17, 2147483648
  %v20 = vxor.u32 %v18, 2147483648
  %v21 = vmul.f32 %v19, 1.442695
  %v22 = vpow.pop %v21
  %v23 = vmul.f32 %v20, 1.442695
  %v24 = vpow.pop %v23
  %v25 = vadd.f32 %v22, 1.0
  %v26 = vadd.f32 %v24, 1.0
  %v27 = vrcp.pop %v25
  %v28 = vmul.f32 1.0, %v27
  %v29 = vrcp.pop %v26
  %v30 = vmul.f32 1.0, %v29
  %v31 = vld [vmem:[%s1] sm:$0xff]
  %v32 = vld [vmem:[%s1 + $0x8] sm:$0xff]
  %v33 = vadd.f32 %v28, %v31
  %v34 = vadd.f32 %v30, %v32
  %v35 = vmul.f32 %v33, 0.5
  %v36 = vmul.f32 %v34, 0.5
  %v37 = vld [vmem:[%s2] sm:$0xff]
  %v38 = vld [vmem:[%s2 + $0x8] sm:$0xff]
  %v39 = vmul.f32 %v37, %v35
  %v40 = vmul.f32 %v38, %v36
  %41 = vst [vmem:[%s3] sm:$0xff] %v39
  %42 = vst [vmem:[%s3 + $0x8] sm:$0xff] %v40
  %v43 = vsub.f32 %v37, %v39
  %v44 = vsub.f32 %v38, %v40
  %45 = vst [vmem:[%s4] sm:$0xff] %v43
  %46 = vst [vmem:[%s4 + $0x8] sm:$0xff] %v44
  %v47 = vand.u32 2147483647, %v39
  %v48 = vand.u32 2147483647, %v40
  %v49 = vadd.f32 %v47, %v48
  %50 = vst [vmem:[%s5] sm:$0xff] %v49
  // Predicated region
  $region14: #{masked_adj_pallas.1} parent=0 // pred_check
    _
  $region15: #{masked_adj_pallas.1} parent=0 // pred_check_branch
    %52 = sbr.rel (0) target = $region17
  $region16: #{masked_adj_pallas.1} parent=0 // pred_region
    _
  $region17: #{masked_adj_pallas.1} parent=0 // pred_fallthru
    _
  // Predicated region
  $region18: #{masked_adj_pallas.1} parent=0 // pred_check
    _
  $region19: #{masked_adj_pallas.1} parent=0 // pred_check_branch
    %54 = sbr.rel (0) target = $region21
  $region20: #{masked_adj_pallas.1} parent=0 // pred_region
    _
  $region21: #{masked_adj_pallas.1} parent=0 // pred_fallthru
    _
  // Predicated region
  $region22: #{masked_adj_pallas.1} parent=0 // pred_check
    _
  $region23: #{masked_adj_pallas.1} parent=0 // pred_check_branch
    %56 = sbr.rel (0) target = $region25
  $region24: #{masked_adj_pallas.1} parent=0 // pred_region
    _
  $region25: #{masked_adj_pallas.1} parent=0 // pred_fallthru
    _
  // Predicated region
  $region26: #{masked_adj_pallas.1} parent=0 // pred_check
    _
  $region27: #{masked_adj_pallas.1} parent=0 // pred_check_branch
    %58 = sbr.rel (0) target = $region29
  $region28: #{masked_adj_pallas.1} parent=0 // pred_region
    _
  $region29: #{masked_adj_pallas.1} parent=0 // pred_fallthru
    _
  // Predicated region
  $region30: #{masked_adj_pallas.1} parent=0 // pred_check
    _
  $region31: #{masked_adj_pallas.1} parent=0 // pred_check_branch
    %60 = sbr.rel (0) target = $region33
  $region32: #{masked_adj_pallas.1} parent=0 // pred_region
    _
  $region33: #{masked_adj_pallas.1} parent=0 // pred_fallthru
    _
  // Predicated region
  $region34: #{masked_adj_pallas.1} parent=0 // pred_check
    _
  $region35: #{masked_adj_pallas.1} parent=0 // pred_check_branch
    %62 = sbr.rel (0) target = $region37
  $region36: #{masked_adj_pallas.1} parent=0 // pred_region
    _
  $region37: #{masked_adj_pallas.1} parent=0 // pred_fallthru
    _

</llo_original>
